<compile_context>
chip_gen: v6e
topology: v6e:2x2x1
jax: 0.10.0
libtpu: 0.0.40
codegen_flags: <defaults>
</compile_context>

<pallas_src>
import functools

import jax
import jax.numpy as jnp
from jax.experimental import pallas as pl
from jax.experimental.pallas import tpu as pltpu


# ----------------------------- parameter prep -----------------------------

def prepare_lstm_params(w_i2h, b_i2h, w_h2h, b_h2h, *, param_dtype=jnp.float32):
    """Hoisted (once per model) parameter prep.

    PyTorch nn.Linear layout: w_i2h [5R, E], w_h2h [5R, R], biases [5R].
    Returns:
      w_x [E, 5R]   input->gates weight (transposed, param_dtype)
      w_h [R, 5R]   hidden->gates weight (transposed, param_dtype)
      b   [1, 5R]   fused bias b_i2h + b_h2h (float32)
    """
    w_x = jnp.asarray(w_i2h).T.astype(param_dtype)
    w_h = jnp.asarray(w_h2h).T.astype(param_dtype)
    b = (jnp.asarray(b_i2h) + jnp.asarray(b_h2h)).reshape(1, -1).astype(jnp.float32)
    return w_x, w_h, b


# ------------------ hoisted i2h (non-recurrent) matmul --------------------

def _i2h_kernel(x_ref, w_ref, b_ref, gx_ref):
    tb, bsz, e = x_ref.shape
    x2d = x_ref[...].reshape(tb * bsz, e).astype(w_ref.dtype)
    gx = jnp.dot(x2d, w_ref[...], preferred_element_type=jnp.float32)
    gx = gx + b_ref[...]
    gx_ref[...] = gx.reshape(tb, bsz, -1)


def _i2h_gates(xs, w_x, b, *, t_block):
    T, B, E = xs.shape
    F = w_x.shape[1]  # 5R
    return pl.pallas_call(
        _i2h_kernel,
        out_shape=jax.ShapeDtypeStruct((T, B, F), jnp.float32),
        grid=(T // t_block,),
        in_specs=[
            pl.BlockSpec((t_block, B, E), lambda t: (t, 0, 0)),
            pl.BlockSpec((E, F), lambda t: (0, 0),
                         pipeline_mode=pl.Buffered(1)),       # resident weight
            pl.BlockSpec((1, F), lambda t: (0, 0),
                         pipeline_mode=pl.Buffered(1)),        # resident bias
        ],
        out_specs=pl.BlockSpec((t_block, B, F), lambda t: (t, 0, 0)),
        compiler_params=pltpu.CompilerParams(
            dimension_semantics=("parallel",)),
    )(xs, w_x, b)


# --------------------------- recurrent kernel -----------------------------

def _lstm_rec_kernel(gx_ref, h0_ref, c0_ref, w_ref,        # inputs
                     hs_ref, hT_ref, cT_ref,               # outputs
                     h_scr, c_scr,                         # scratch (carries)
                     *, rnn_size, t_block):
    R = rnn_size
    t = pl.program_id(1)

    # Load initial state into the resident carries at the start of each
    # batch shard's time sweep.
    @pl.when(t == 0)
    def _():
        h_scr[...] = h0_ref[...].astype(h_scr.dtype)
        c_scr[...] = c0_ref[...].astype(jnp.float32)

    h = h_scr[...]          # matmul-LHS dtype (== weight dtype)
    c = c_scr[...]          # float32
    h_f32 = None

    # Statically unrolled chunk of t_block timesteps (serial dependence on h, c).
    for tb in range(t_block):
        s = jnp.dot(h, w_ref[...], preferred_element_type=jnp.float32)
        s = s + gx_ref[tb]                       # precomputed i2h(x_t) + bias
        in_gate = jax.nn.sigmoid(s[:, 0 * R:1 * R])
        forget_gate = jax.nn.sigmoid(s[:, 1 * R:2 * R])
        out_gate = jax.nn.sigmoid(s[:, 2 * R:3 * R])
        in_transform = jnp.maximum(s[:, 3 * R:4 * R], s[:, 4 * R:5 * R])
        c = forget_gate * c + in_gate * in_transform
        h_f32 = out_gate * jnp.tanh(c)
        hs_ref[tb] = h_f32.astype(hs_ref.dtype)
        h = h_f32.astype(h_scr.dtype)            # carry in matmul-LHS dtype

    h_scr[...] = h
    c_scr[...] = c
    # Written every chunk (cheap [B,R]); last chunk's value is what lands in HBM.
    hT_ref[...] = h_f32.astype(hT_ref.dtype)
    cT_ref[...] = c.astype(cT_ref.dtype)


def lstm_core_sequence(xs, state, params, *, rnn_size, t_block=None,
                       num_batch_shards=1):
    """Run T LSTMCore steps (eval-mode dropout = identity).

    xs: [T, B, E]; state: (h [1, B, R], c [1, B, R]); params from
    prepare_lstm_params.  Returns (hs [T, B, R], (h_T [1,B,R], c_T [1,B,R])).
    """
    w_x, w_h, b = params
    T, B, E = xs.shape
    R = rnn_size
    assert w_x.shape == (E, 5 * R) and w_h.shape == (R, 5 * R)
    assert E % 128 == 0 and R % 128 == 0, "E and R must be multiples of 128"
    assert B % num_batch_shards == 0
    Bs = B // num_batch_shards
    assert Bs % 8 == 0, "per-shard batch must be a multiple of 8 (sublane tile)"

    if t_block is None:
        t_block = max(d for d in range(1, min(T, 8) + 1) if T % d == 0)
    assert T % t_block == 0

    h0 = state[0][-1]          # [B, R]
    c0 = state[1][-1]          # [B, R]

    # Non-recurrent half, off the serial critical path:
    # gates_x[t] = x_t @ W_i2h^T + (b_i2h + b_h2h), float32.
    gx = _i2h_gates(xs, w_x, b, t_block=t_block)

    # Rough per-core VMEM need; raise the scoped limit only when the default
    # (16 MiB v5e / 32 MiB v6e,v7x) would be the binding constraint.
    isz = lambda d: jnp.dtype(d).itemsize
    vmem_need = (
        2 * t_block * Bs * 5 * R * 4                 # gx blocks (double-buffered)
        + 2 * t_block * Bs * R * isz(xs.dtype)       # hs blocks
        + R * 5 * R * isz(w_h.dtype)                 # resident W_h2h (Buffered(1))
        + 8 * Bs * R * isz(xs.dtype)                 # h0/c0/hT/cT blocks
        + Bs * R * (isz(w_h.dtype) + 4)              # h/c carries
    )
    vmem_limit = None if vmem_need <= (14 << 20) else min(
        int(vmem_need * 3 // 2), 128 << 20)

    kernel = functools.partial(_lstm_rec_kernel, rnn_size=R, t_block=t_block)

    hs, hT, cT = pl.pallas_call(
        kernel,
        out_shape=(jax.ShapeDtypeStruct((T, B, R), xs.dtype),
                   jax.ShapeDtypeStruct((B, R), xs.dtype),
                   jax.ShapeDtypeStruct((B, R), xs.dtype)),
        grid=(num_batch_shards, T // t_block),
        in_specs=[
            pl.BlockSpec((t_block, Bs, 5 * R), lambda bi, ti: (ti, bi, 0)),  # gx
            pl.BlockSpec((Bs, R), lambda bi, ti: (bi, 0)),                   # h0
            pl.BlockSpec((Bs, R), lambda bi, ti: (bi, 0)),                   # c0
            pl.BlockSpec((R, 5 * R), lambda bi, ti: (0, 0),
                         pipeline_mode=pl.Buffered(1)),     # resident W_h2h
        ],
        out_specs=(
            pl.BlockSpec((t_block, Bs, R), lambda bi, ti: (ti, bi, 0)),      # hs
            pl.BlockSpec((Bs, R), lambda bi, ti: (bi, 0)),                   # h_T
            pl.BlockSpec((Bs, R), lambda bi, ti: (bi, 0)),                   # c_T
        ),
        scratch_shapes=[
            pltpu.VMEM((Bs, R), w_h.dtype),      # h carry (matmul-LHS dtype)
            pltpu.VMEM((Bs, R), jnp.float32),    # c carry
        ],
        compiler_params=pltpu.CompilerParams(
            dimension_semantics=("parallel", "arbitrary"),
            vmem_limit_bytes=vmem_limit),
    )(gx, h0, c0, w_h)

    return hs, (hT[None], cT[None])


def lstm_core_forward(xt, state, params, *, rnn_size):
    """Single-step forward matching LSTMCore.forward (dropout = eval identity)."""
    hs, new_state = lstm_core_sequence(xt[None], state, params,
                                       rnn_size=rnn_size, t_block=1)
    return hs[0], new_state


# --------------------------- pure-JAX references ---------------------------

def _reference_step(xt, h, c, w_i2h, b_i2h, w_h2h, b_h2h, R):
    s = xt @ w_i2h.T + b_i2h + h @ w_h2h.T + b_h2h
    in_g = jax.nn.sigmoid(s[:, :R])
    fg = jax.nn.sigmoid(s[:, R:2 * R])
    og = jax.nn.sigmoid(s[:, 2 * R:3 * R])
    it = jnp.maximum(s[:, 3 * R:4 * R], s[:, 4 * R:5 * R])
    nc = fg * c + in_g * it
    nh = og * jnp.tanh(nc)
    return nh, nc


def _reference_sequence(xs, h, c, w_i2h, b_i2h, w_h2h, b_h2h, R):
    outs = []
    for t in range(xs.shape[0]):
        h, c = _reference_step(xs[t], h, c, w_i2h, b_i2h, w_h2h, b_h2h, R)
        outs.append(h)
    return jnp.stack(outs), h, c


if __name__ == "__main__":
    T = 8            # sequence length
    B = 16           # batch
    E = 128          # input_encoding_size
    R = 128          # rnn_size
    drop_prob_lm = 0.5  # unused at inference (eval-mode dropout = identity)

    key = jax.random.PRNGKey(0)
    k = jax.random.split(key, 7)
    xs = jax.random.normal(k[0], (T, B, E), dtype=jnp.float32)
    h0 = jax.random.normal(k[1], (1, B, R), dtype=jnp.float32)
    c0 = jax.random.normal(k[2], (1, B, R), dtype=jnp.float32)
    # PyTorch Linear shapes: [out, in], [out]
    w_i2h = jax.random.normal(k[3], (5 * R, E), dtype=jnp.float32) * 0.02
    b_i2h = jax.random.normal(k[4], (5 * R,), dtype=jnp.float32) * 0.02
    w_h2h = jax.random.normal(k[5], (5 * R, R), dtype=jnp.float32) * 0.02
    b_h2h = jax.random.normal(k[6], (5 * R,), dtype=jnp.float32) * 0.02

    # ---- f32 weights: single step (module semantics), strict check ----
    p32 = prepare_lstm_params(w_i2h, b_i2h, w_h2h, b_h2h, param_dtype=jnp.float32)
    out1, (nh1, nc1) = lstm_core_forward(xs[0], (h0, c0), p32, rnn_size=R)
    jax.block_until_ready((out1, nh1, nc1))
    ref_h1, ref_c1 = _reference_step(xs[0], h0[-1], c0[-1],
                                     w_i2h, b_i2h, w_h2h, b_h2h, R)
    assert jnp.allclose(out1, ref_h1, atol=1e-5, rtol=1e-5)
    assert jnp.allclose(nh1[0], ref_h1, atol=1e-5, rtol=1e-5)
    assert jnp.allclose(nc1[0], ref_c1, atol=1e-5, rtol=1e-5)

    ref_hs, ref_hT, ref_cT = _reference_sequence(xs, h0[-1], c0[-1],
                                                 w_i2h, b_i2h, w_h2h, b_h2h, R)

    # ---- f32: T-step sequence, multi-chunk carry (t_block=4 -> 2 time chunks) ----
    hs, (nhT, ncT) = lstm_core_sequence(xs, (h0, c0), p32, rnn_size=R, t_block=4)
    jax.block_until_ready((hs, nhT, ncT))
    assert jnp.allclose(hs, ref_hs, atol=1e-5, rtol=1e-5)
    assert jnp.allclose(nhT[0], ref_hT, atol=1e-5, rtol=1e-5)
    assert jnp.allclose(ncT[0], ref_cT, atol=1e-5, rtol=1e-5)

    # ---- f32: batch-sharded "parallel" leading axis (v7x megacore path) ----
    hs_p, (nhT_p, ncT_p) = lstm_core_sequence(xs, (h0, c0), p32, rnn_size=R,
                                              t_block=8, num_batch_shards=2)
    jax.block_until_ready((hs_p, nhT_p, ncT_p))
    assert jnp.allclose(hs_p, ref_hs, atol=1e-5, rtol=1e-5)
    assert jnp.allclose(nhT_p[0], ref_hT, atol=1e-5, rtol=1e-5)
    assert jnp.allclose(ncT_p[0], ref_cT, atol=1e-5, rtol=1e-5)

    # ---- bf16 weights (half HBM traffic), f32 gate math: loose check ----
    p16 = prepare_lstm_params(w_i2h, b_i2h, w_h2h, b_h2h, param_dtype=jnp.bfloat16)
    hs16, _ = lstm_core_sequence(xs, (h0, c0), p16, rnn_size=R, t_block=4)
    jax.block_until_ready(hs16)
    wq_i2h = w_i2h.astype(jnp.bfloat16).astype(jnp.float32)
    wq_h2h = w_h2h.astype(jnp.bfloat16).astype(jnp.float32)
    ref_hs16, _, _ = _reference_sequence(xs, h0[-1], c0[-1],
                                         wq_i2h, b_i2h, wq_h2h, b_h2h, R)
    assert jnp.allclose(hs16, ref_hs16, atol=3e-2, rtol=3e-2)

    print("KERNEL_OK")
</pallas_src>

<mosaic_0001>
module attributes {stable_mosaic.version = 11 : i64} {
  func.func @_i2h_kernel(%arg0: i32, %arg1: memref<1x16x128xf32, #tpu.memory_space<vmem>>, %arg2: memref<128x640xf32, #tpu.memory_space<vmem>>, %arg3: memref<1x640xf32, #tpu.memory_space<vmem>>, %arg4: memref<1x16x640xf32, #tpu.memory_space<vmem>>) attributes {dimension_semantics = [#tpu.dimension_semantics<parallel>], iteration_bounds = array<i64: 1>, scalar_prefetch = 0 : i64, scratch_operands = 0 : i64, tpu.core_type = #tpu.core_type<tc>, window_params = [{transform_indices = @transform_0, window_bounds = array<i64: 1, 16, 128>}, {pipeline_mode = #tpu.pipeline_mode<synchronous>, transform_indices = @transform_1, window_bounds = array<i64: 128, 640>}, {pipeline_mode = #tpu.pipeline_mode<synchronous>, transform_indices = @transform_2, window_bounds = array<i64: 1, 640>}, {transform_indices = @transform_3, window_bounds = array<i64: 1, 16, 640>}]} {
    %c0 = arith.constant 0 : index
    %c0_0 = arith.constant 0 : index
    %c0_1 = arith.constant 0 : index
    %0 = vector.load %arg1[%c0, %c0_0, %c0_1] : memref<1x16x128xf32, #tpu.memory_space<vmem>>, vector<1x16x128xf32>
    %1 = vector.shape_cast %0 : vector<1x16x128xf32> to vector<16x128xf32>
    %c0_2 = arith.constant 0 : index
    %c0_3 = arith.constant 0 : index
    %2 = vector.load %arg2[%c0_2, %c0_3] : memref<128x640xf32, #tpu.memory_space<vmem>>, vector<128x640xf32>
    %cst = arith.constant dense<0.000000e+00> : vector<16x640xf32>
    %3 = tpu.matmul %1, %2, %cst {dimension_numbers = #tpu.dot_dimension_numbers<[1], [0], [0], [1], [0, 0, 1, 1], [], []>} : vector<16x128xf32>, vector<128x640xf32>, vector<16x640xf32> -> vector<16x640xf32>
    %c0_4 = arith.constant 0 : index
    %c0_5 = arith.constant 0 : index
    %4 = vector.load %arg3[%c0_4, %c0_5] : memref<1x640xf32, #tpu.memory_space<vmem>>, vector<1x640xf32>
    %5 = vector.broadcast %4 : vector<1x640xf32> to vector<16x640xf32>
    %6 = arith.addf %3, %5 : vector<16x640xf32>
    %7 = vector.shape_cast %6 : vector<16x640xf32> to vector<1x16x640xf32>
    %c0_6 = arith.constant 0 : index
    %c0_7 = arith.constant 0 : index
    %c0_8 = arith.constant 0 : index
    %8 = vector.load %arg4[%c0_6, %c0_7, %c0_8] : memref<1x16x640xf32, #tpu.memory_space<vmem>>, vector<1x16x640xf32>
    tpu.vector_store %arg4[%c0_6, %c0_7, %c0_8], %7 {strides = array<i32>} : memref<1x16x640xf32, #tpu.memory_space<vmem>>, vector<1x16x640xf32>,
    return
  }
  func.func @transform_0(%arg0: i32) -> (i32, i32, i32) {
    %c0_i32 = arith.constant 0 : i32
    %c0_i32_0 = arith.constant 0 : i32
    %c0_i32_1 = arith.constant 0 : i32
    return %arg0, %c0_i32, %c0_i32_0 : i32, i32, i32
  }
  func.func @transform_1(%arg0: i32) -> (i32, i32) {
    %c0_i32 = arith.constant 0 : i32
    %c0_i32_0 = arith.constant 0 : i32
    %c0_i32_1 = arith.constant 0 : i32
    return %c0_i32, %c0_i32_0 : i32, i32
  }
  func.func @transform_2(%arg0: i32) -> (i32, i32) {
    %c0_i32 = arith.constant 0 : i32
    %c0_i32_0 = arith.constant 0 : i32
    %c0_i32_1 = arith.constant 0 : i32
    return %c0_i32, %c0_i32_0 : i32, i32
  }
  func.func @transform_3(%arg0: i32) -> (i32, i32, i32) {
    %c0_i32 = arith.constant 0 : i32
    %c0_i32_0 = arith.constant 0 : i32
    %c0_i32_1 = arith.constant 0 : i32
    return %arg0, %c0_i32, %c0_i32_0 : i32, i32, i32
  }
}

</mosaic_0001>

<llo_original>
// kernel: tpu_custom_call.1
$region0: #{tpu_custom_call.1}
  #allocation0 [shape = 'u32[]', space=smem, size = 0x4, offset = 0x4, fixed_abs, tag = 'smem constant byte address 0x4 - core index']
  #allocation1 [shape = 'u32[144,128]{1,0:T(1,128)}', space=vmem, size = 0x12000, scoped, tag = 'internal scratch']
  %s0 = inlined_call_operand.hbm [shape: f32[1,16,128], index: 0, kind: input, shape index: {}]
  %s1 = inlined_call_operand.hbm [shape: f32[128,640], index: 1, kind: input, shape index: {}]
  %s2 = inlined_call_operand.hbm [shape: f32[1,640], index: 2, kind: input, shape index: {}]
  %s3 = inlined_call_operand.hbm [shape: f32[1,16,640], index: 3, kind: output, shape index: {}]
  %s4 = sld [smem:[#allocation0]]
  $region34: #{tpu_custom_call.1} parent=0
    _
  %s6 = ssub.s32 1, %s4
  %s7 = scalar_select 0, %s6, %s4
  $region1: #{tpu_custom_call.1} parent=0
    #allocation2 [shape = 'u8[8192]{0}', space=vmem, size = 0x2000, scoped, tag = 'input window, operand 0, single buffered']
    #allocation3 [shape = 's32[1]{0}', space=sflag, size = 0x4, scoped, tag = 'scoped memory for tpu_custom_call.1']
    #allocation4 [shape = 's32[1]{0}', space=sflag, size = 0x4, scoped, tag = 'scoped memory for tpu_custom_call.1']
    #allocation5 [shape = 'u8[327680]{0}', space=vmem, size = 0x50000, scoped, tag = 'input window, operand 1, single buffered']
    #allocation6 [shape = 's32[1]{0}', space=sflag, size = 0x4, scoped, tag = 'scoped memory for tpu_custom_call.1']
    #allocation7 [shape = 'u8[2560]{0}', space=vmem, size = 0xc00, scoped, tag = 'input window, operand 2, single buffered']
    #allocation8 [shape = 'u8[40960]{0}', space=vmem, size = 0xa000, scoped, tag = 'output window, operand 0, single buffered']
    %8 = vsyncpa [#allocation3], 0
    %9 = vsyncpa [#allocation6], 0
    %10 = vsyncpa [#allocation4], 0
    // Predicated region
    $region2: #{tpu_custom_call.1} parent=1 // pred_check
      _
    $region3: #{tpu_custom_call.1} parent=1 // pred_check_branch
      %12 = sbr.rel (0) target = $region5
    $region4: #{tpu_custom_call.1} parent=1 // pred_region
      %s14 = ssub.s32 256, 256
      %15 = vsyncadd [#allocation3], %s14
      %s16 = sshll.u32 [#allocation2], 4
      %s17 = int_to_ptr.vmem [resolvable:$true] %s16
      %22 = dma.hbm_to_vmem [thread:$0]  %s0, 256, %s17, [#allocation3], 128, 128, 8
    $region5: #{tpu_custom_call.1} parent=1 // pred_fallthru
      _
    // Predicated region
    $region6: #{tpu_custom_call.1} parent=1 // pred_check
      _
    $region7: #{tpu_custom_call.1} parent=1 // pred_check_branch
      %24 = sbr.rel (0) target = $region9
    $region8: #{tpu_custom_call.1} parent=1 // pred_region
      %s26 = ssub.s32 10240, 10240
      %27 = vsyncadd [#allocation6], %s26
      %s28 = sshll.u32 [#allocation5], 4
      %s29 = int_to_ptr.vmem [resolvable:$true] %s28
      %34 = dma.hbm_to_vmem [thread:$0]  %s1, 10240, %s29, [#allocation6], 640, 640, 40
    $region9: #{tpu_custom_call.1} parent=1 // pred_fallthru
      _
    // Predicated region
    $region10: #{tpu_custom_call.1} parent=1 // pred_check
      _
    $region11: #{tpu_custom_call.1} parent=1 // pred_check_branch
      %36 = sbr.rel (0) target = $region13
    $region12: #{tpu_custom_call.1} parent=1 // pred_region
      %s38 = ssub.s32 80, 80
      %39 = vsyncadd [#allocation6], %s38
      %s41 = sshll.u32 [#allocation7], 4
      %s42 = int_to_ptr.vmem [resolvable:$true] %s41
      %44 = dma.hbm_to_vmem [thread:$0]  %s2, 80, %s42, [#allocation6]
    $region13: #{tpu_custom_call.1} parent=1 // pred_fallthru
      _
    // Predicated region
    $region14: #{tpu_custom_call.1} parent=1 // pred_check
      _
    $region15: #{tpu_custom_call.1} parent=1 // pred_check_branch
      %46 = sbr.rel (0) target = $region17
    $region16: #{tpu_custom_call.1} parent=1 // pred_region
      %47 = dma.done [#allocation3], 256
    $region17: #{tpu_custom_call.1} parent=1 // pred_fallthru
      _
    // Predicated region
    $region18: #{tpu_custom_call.1} parent=1 // pred_check
      _
    $region19: #{tpu_custom_call.1} parent=1 // pred_check_branch
      %49 = sbr.rel (0) target = $region21
    $region20: #{tpu_custom_call.1} parent=1 // pred_region
      %50 = dma.done [#allocation6], 10240
    $region21: #{tpu_custom_call.1} parent=1 // pred_fallthru
      _
    // Predicated region
    $region22: #{tpu_custom_call.1} parent=1 // pred_check
      _
    $region23: #{tpu_custom_call.1} parent=1 // pred_check_branch
      %52 = sbr.rel (0) target = $region25
    $region24: #{tpu_custom_call.1} parent=1 // pred_region
      %53 = dma.done [#allocation6], 80
    $region25: #{tpu_custom_call.1} parent=1 // pred_fallthru
      _
    %v54 = vld [vmem:[#allocation2] sm:$0xff]
    %v55 = vld [vmem:[#allocation2 + $0x8] sm:$0xff]
    %v56 = vld [vmem:[#allocation5] sm:$0xff]
    %v57 = vld [vmem:[#allocation5 + $0x8] sm:$0xff]
    %v58 = vld [vmem:[#allocation5 + $0x10] sm:$0xff]
    %v59 = vld [vmem:[#allocation5 + $0x18] sm:$0xff]
    %v60 = vld [vmem:[#allocation5 + $0x20] sm:$0xff]
    %v61 = vld [vmem:[#allocation5 + $0x28] sm:$0xff]
    %v62 = vld [vmem:[#allocation5 + $0x30] sm:$0xff]
    %v63 = vld [vmem:[#allocation5 + $0x38] sm:$0xff]
    %v64 = vld [vmem:[#allocation5 + $0x40] sm:$0xff]
    %v65 = vld [vmem:[#allocation5 + $0x48] sm:$0xff]
    %v66 = vld [vmem:[#allocation5 + $0x50] sm:$0xff]
    %v67 = vld [vmem:[#allocation5 + $0x58] sm:$0xff]
    %v68 = vld [vmem:[#allocation5 + $0x60] sm:$0xff]
    %v69 = vld [vmem:[#allocation5 + $0x68] sm:$0xff]
    %v70 = vld [vmem:[#allocation5 + $0x70] sm:$0xff]
    %v71 = vld [vmem:[#allocation5 + $0x78] sm:$0xff]
    %v72 = vld [vmem:[#allocation5 + $0x80] sm:$0xff]
    %v73 = vld [vmem:[#allocation5 + $0x88] sm:$0xff]
    %v74 = vld [vmem:[#allocation5 + $0x90] sm:$0xff]
    %v75 = vld [vmem:[#allocation5 + $0x98] sm:$0xff]
    %v76 = vld [vmem:[#allocation5 + $0xa0] sm:$0xff]
    %v77 = vld [vmem:[#allocation5 + $0xa8] sm:$0xff]
    %v78 = vld [vmem:[#allocation5 + $0xb0] sm:$0xff]
    %v79 = vld [vmem:[#allocation5 + $0xb8] sm:$0xff]
    %v80 = vld [vmem:[#allocation5 + $0xc0] sm:$0xff]
    %v81 = vld [vmem:[#allocation5 + $0xc8] sm:$0xff]
    %v82 = vld [vmem:[#allocation5 + $0xd0] sm:$0xff]
    %v83 = vld [vmem:[#allocation5 + $0xd8] sm:$0xff]
    %v84 = vld [vmem:[#allocation5 + $0xe0] sm:$0xff]
    %v85 = vld [vmem:[#allocation5 + $0xe8] sm:$0xff]
    %v86 = vld [vmem:[#allocation5 + $0xf0] sm:$0xff]
    %v87 = vld [vmem:[#allocation5 + $0xf8] sm:$0xff]
    %v88 = vld [vmem:[#allocation5 + $0x100] sm:$0xff]
    %v89 = vld [vmem:[#allocation5 + $0x108] sm:$0xff]
    %v90 = vld [vmem:[#allocation5 + $0x110] sm:$0xff]
    %v91 = vld [vmem:[#allocation5 + $0x118] sm:$0xff]
    %v92 = vld [vmem:[#allocation5 + $0x120] sm:$0xff]
    %v93 = vld [vmem:[#allocation5 + $0x128] sm:$0xff]
    %v94 = vld [vmem:[#allocation5 + $0x130] sm:$0xff]
    %v95 = vld [vmem:[#allocation5 + $0x138] sm:$0xff]
    %v96 = vld [vmem:[#allocation5 + $0x140] sm:$0xff]
    %v97 = vld [vmem:[#allocation5 + $0x148] sm:$0xff]
    %v98 = vld [vmem:[#allocation5 + $0x150] sm:$0xff]
    %v99 = vld [vmem:[#allocation5 + $0x158] sm:$0xff]
    %v100 = vld [vmem:[#allocation5 + $0x160] sm:$0xff]
    %v101 = vld [vmem:[#allocation5 + $0x168] sm:$0xff]
    %v102 = vld [vmem:[#allocation5 + $0x170] sm:$0xff]
    %v103 = vld [vmem:[#allocation5 + $0x178] sm:$0xff]
    %v104 = vld [vmem:[#allocation5 + $0x180] sm:$0xff]
    %v105 = vld [vmem:[#allocation5 + $0x188] sm:$0xff]
    %v106 = vld [vmem:[#allocation5 + $0x190] sm:$0xff]
    %v107 = vld [vmem:[#allocation5 + $0x198] sm:$0xff]
    %v108 = vld [vmem:[#allocation5 + $0x1a0] sm:$0xff]
    %v109 = vld [vmem:[#allocation5 + $0x1a8] sm:$0xff]
    %v110 = vld [vmem:[#allocation5 + $0x1b0] sm:$0xff]
    %v111 = vld [vmem:[#allocation5 + $0x1b8] sm:$0xff]
    %v112 = vld [vmem:[#allocation5 + $0x1c0] sm:$0xff]
    %v113 = vld [vmem:[#allocation5 + $0x1c8] sm:$0xff]
    %v114 = vld [vmem:[#allocation5 + $0x1d0] sm:$0xff]
    %v115 = vld [vmem:[#allocation5 + $0x1d8] sm:$0xff]
    %v116 = vld [vmem:[#allocation5 + $0x1e0] sm:$0xff]
    %v117 = vld [vmem:[#allocation5 + $0x1e8] sm:$0xff]
    %v118 = vld [vmem:[#allocation5 + $0x1f0] sm:$0xff]
    %v119 = vld [vmem:[#allocation5 + $0x1f8] sm:$0xff]
    %v120 = vld [vmem:[#allocation5 + $0x200] sm:$0xff]
    %v121 = vld [vmem:[#allocation5 + $0x208] sm:$0xff]
    %v122 = vld [vmem:[#allocation5 + $0x210] sm:$0xff]
    %v123 = vld [vmem:[#allocation5 + $0x218] sm:$0xff]
    %v124 = vld [vmem:[#allocation5 + $0x220] sm:$0xff]
    %v125 = vld [vmem:[#allocation5 + $0x228] sm:$0xff]
    %v126 = vld [vmem:[#allocation5 + $0x230] sm:$0xff]
    %v127 = vld [vmem:[#allocation5 + $0x238] sm:$0xff]
    %v128 = vld [vmem:[#allocation5 + $0x240] sm:$0xff]
    %v129 = vld [vmem:[#allocation5 + $0x248] sm:$0xff]
    %v130 = vld [vmem:[#allocation5 + $0x250] sm:$0xff]
    %v131 = vld [vmem:[#allocation5 + $0x258] sm:$0xff]
    %v132 = vld [vmem:[#allocation5 + $0x260] sm:$0xff]
    %v133 = vld [vmem:[#allocation5 + $0x268] sm:$0xff]
    %v134 = vld [vmem:[#allocation5 + $0x270] sm:$0xff]
    %v135 = vld [vmem:[#allocation5 + $0x278] sm:$0xff]
    %v136 = vld [vmem:[#allocation7] sm:$0x1f]
    %v138 = vlaneseq
    %v139 = vshrl.u32 %v138, 7
    %v140 = vsub.s32 0, %v139
    %v141 = vrot.slane %v136, %v140
    %v142 = vlaneseq
    %v143 = vshrl.u32 %v142, 7
    %v144 = vsub.s32 1, %v143
    %v145 = vrot.slane %v136, %v144
    %v146 = vlaneseq
    %v147 = vshrl.u32 %v146, 7
    %v148 = vsub.s32 2, %v147
    %v149 = vrot.slane %v136, %v148
    %v150 = vlaneseq
    %v151 = vshrl.u32 %v150, 7
    %v152 = vsub.s32 3, %v151
    %v153 = vrot.slane %v136, %v152
    %v154 = vlaneseq
    %v155 = vshrl.u32 %v154, 7
    %v156 = vsub.s32 4, %v155
    %v157 = vrot.slane %v136, %v156
    %163 = vmatprep.subr.mxu0 %v132
    %164 = vmatpush1.msra.mxu0 %v131
    %165 = vmatprep.subr.mxu0 %v127
    %166 = vmatpush1.msra.mxu0 %v126
    %167 = vmatprep.subr.mxu0 %v122
    %168 = vmatpush1.msra.mxu0 %v121
    %169 = vmatprep.subr.mxu0 %v117
    %170 = vmatpush1.msra.mxu0 %v116
    %171 = vmatprep.subr.mxu0 %v112
    %172 = vmatpush1.msra.mxu0 %v111
    %173 = vmatprep.subr.mxu0 %v107
    %174 = vmatpush1.msra.mxu0 %v106
    %175 = vmatprep.subr.mxu0 %v102
    %176 = vmatpush1.msra.mxu0 %v101
    %177 = vmatprep.subr.mxu0 %v97
    %178 = vmatpush1.msra.mxu0 %v96
    %179 = vmatprep.subr.mxu0 %v92
    %180 = vmatpush1.msra.mxu0 %v91
    %181 = vmatprep.subr.mxu0 %v87
    %182 = vmatpush1.msra.mxu0 %v86
    %183 = vmatprep.subr.mxu0 %v82
    %184 = vmatpush1.msra.mxu0 %v81
    %185 = vmatprep.subr.mxu0 %v77
    %186 = vmatpush1.msra.mxu0 %v76
    %187 = vmatprep.subr.mxu0 %v72
    %188 = vmatpush1.msra.mxu0 %v71
    %189 = vmatprep.subr.mxu0 %v67
    %190 = vmatpush1.msra.mxu0 %v66
    %191 = vmatprep.subr.mxu0 %v62
    %192 = vmatpush1.msra.mxu0 %v61
    %193 = vmatprep.subr.mxu0 %v57
    %194 = vmatpush1.msra.mxu0 %v56
    %195 = vmatprep.subr.mxu0 0.0
    %196 = vmatpush2.msra.mxu0 0.0
    %197 = vmatprep.subr.mxu0 0.0
    %198 = vmatpush2.msra.mxu0 0.0
    %199 = vmatprep.subr.mxu0 0.0
    %200 = vmatpush2.msra.mxu0 0.0
    %201 = vmatprep.subr.mxu0 0.0
    %202 = vmatpush2.msra.mxu0 0.0
    %203 = vmatprep.subr.mxu0 0.0
    %204 = vmatpush2.msra.mxu0 0.0
    %205 = vmatprep.subr.mxu0 0.0
    %206 = vmatpush2.msra.mxu0 0.0
    %207 = vmatprep.subr.mxu0 0.0
    %208 = vmatpush2.msra.mxu0 0.0
    %209 = vmatprep.subr.mxu0 0.0
    %210 = vmatpush2.msra.mxu0 0.0
    %211 = vmatprep.subr.mxu0 0.0
    %212 = vmatpush2.msra.mxu0 0.0
    %213 = vmatprep.subr.mxu0 0.0
    %214 = vmatpush2.msra.mxu0 0.0
    %215 = vmatprep.subr.mxu0 0.0
    %216 = vmatpush2.msra.mxu0 0.0
    %217 = vmatprep.subr.mxu0 0.0
    %218 = vmatpush2.msra.mxu0 0.0
    %219 = vmatprep.subr.mxu0 0.0
    %220 = vmatpush2.msra.mxu0 0.0
    %221 = vmatprep.subr.mxu0 0.0
    %222 = vmatpush2.msra.mxu0 0.0
    %223 = vmatprep.subr.mxu0 0.0
    %224 = vmatpush2.msra.mxu0 0.0
    %225 = vmatprep.subr.mxu0 0.0
    %226 = vmatpush2.msra.mxu0 0.0
    %227 = vmatprep.mubr.f32.mxu0 0.0
    %228 = vmatmul.mubr.f32.gmra.mxu0 %v54
    %v229 = vpop.f32.mrf.mxu0
    %v230 = vadd.f32 %v141, %v229
    %v231 = vpop.f32.mrf.mxu0
    %v232 = vadd.f32 %v145, %v231
    %233 = vmatprep.mubr.f32.mxu0 0.0
    %234 = vmatmul.mubr.f32.gmra.mxu0 %v55
    %v235 = vpop.f32.mrf.mxu0
    %v236 = vadd.f32 %v141, %v235
    %v237 = vpop.f32.mrf.mxu0
    %v238 = vadd.f32 %v145, %v237
    %239 = vdwg.mxu0
    %240 = vmatprep.subr.mxu0 %v134
    %241 = vmatpush1.msra.mxu0 %v133
    %242 = vmatprep.subr.mxu0 %v129
    %243 = vmatpush1.msra.mxu0 %v128
    %244 = vmatprep.subr.mxu0 %v124
    %245 = vmatpush1.msra.mxu0 %v123
    %246 = vmatprep.subr.mxu0 %v119
    %247 = vmatpush1.msra.mxu0 %v118
    %248 = vmatprep.subr.mxu0 %v114
    %249 = vmatpush1.msra.mxu0 %v113
    %250 = vmatprep.subr.mxu0 %v109
    %251 = vmatpush1.msra.mxu0 %v108
    %252 = vmatprep.subr.mxu0 %v104
    %253 = vmatpush1.msra.mxu0 %v103
    %254 = vmatprep.subr.mxu0 %v99
    %255 = vmatpush1.msra.mxu0 %v98
    %256 = vmatprep.subr.mxu0 %v94
    %257 = vmatpush1.msra.mxu0 %v93
    %258 = vmatprep.subr.mxu0 %v89
    %259 = vmatpush1.msra.mxu0 %v88
    %260 = vmatprep.subr.mxu0 %v84
    %261 = vmatpush1.msra.mxu0 %v83
    %262 = vmatprep.subr.mxu0 %v79
    %263 = vmatpush1.msra.mxu0 %v78
    %264 = vmatprep.subr.mxu0 %v74
    %265 = vmatpush1.msra.mxu0 %v73
    %266 = vmatprep.subr.mxu0 %v69
    %267 = vmatpush1.msra.mxu0 %v68
    %268 = vmatprep.subr.mxu0 %v64
    %269 = vmatpush1.msra.mxu0 %v63
    %270 = vmatprep.subr.mxu0 %v59
    %271 = vmatpush1.msra.mxu0 %v58
    %272 = vmatprep.subr.mxu0 0.0
    %273 = vmatpush2.msra.mxu0 0.0
    %274 = vmatprep.subr.mxu0 0.0
    %275 = vmatpush2.msra.mxu0 0.0
    %276 = vmatprep.subr.mxu0 0.0
    %277 = vmatpush2.msra.mxu0 0.0
    %278 = vmatprep.subr.mxu0 0.0
    %279 = vmatpush2.msra.mxu0 0.0
    %280 = vmatprep.subr.mxu0 0.0
    %281 = vmatpush2.msra.mxu0 0.0
    %282 = vmatprep.subr.mxu0 0.0
    %283 = vmatpush2.msra.mxu0 0.0
    %284 = vmatprep.subr.mxu0 0.0
    %285 = vmatpush2.msra.mxu0 0.0
    %286 = vmatprep.subr.mxu0 0.0
    %287 = vmatpush2.msra.mxu0 0.0
    %288 = vmatprep.subr.mxu0 0.0
    %289 = vmatpush2.msra.mxu0 0.0
    %290 = vmatprep.subr.mxu0 0.0
    %291 = vmatpush2.msra.mxu0 0.0
    %292 = vmatprep.subr.mxu0 0.0
    %293 = vmatpush2.msra.mxu0 0.0
    %294 = vmatprep.subr.mxu0 0.0
    %295 = vmatpush2.msra.mxu0 0.0
    %296 = vmatprep.subr.mxu0 0.0
    %297 = vmatpush2.msra.mxu0 0.0
    %298 = vmatprep.subr.mxu0 0.0
    %299 = vmatpush2.msra.mxu0 0.0
    %300 = vmatprep.subr.mxu0 0.0
    %301 = vmatpush2.msra.mxu0 0.0
    %302 = vmatprep.subr.mxu0 0.0
    %303 = vmatpush2.msra.mxu0 0.0
    %304 = vmatprep.mubr.f32.mxu0 0.0
    %305 = vmatmul.mubr.f32.gmra.mxu0 %v54
    %v306 = vpop.f32.mrf.mxu0
    %v307 = vadd.f32 %v149, %v306
    %v308 = vpop.f32.mrf.mxu0
    %v309 = vadd.f32 %v153, %v308
    %310 = vmatprep.mubr.f32.mxu0 0.0
    %311 = vmatmul.mubr.f32.gmra.mxu0 %v55
    %v312 = vpop.f32.mrf.mxu0
    %v313 = vadd.f32 %v149, %v312
    %v314 = vpop.f32.mrf.mxu0
    %v315 = vadd.f32 %v153, %v314
    %316 = vdwg.mxu0
    %317 = vmatprep.subr.mxu0 0.0
    %318 = vmatpush1.msra.mxu0 %v135
    %319 = vmatprep.subr.mxu0 0.0
    %320 = vmatpush1.msra.mxu0 %v130
    %321 = vmatprep.subr.mxu0 0.0
    %322 = vmatpush1.msra.mxu0 %v125
    %323 = vmatprep.subr.mxu0 0.0
    %324 = vmatpush1.msra.mxu0 %v120
    %325 = vmatprep.subr.mxu0 0.0
    %326 = vmatpush1.msra.mxu0 %v115
    %327 = vmatprep.subr.mxu0 0.0
    %328 = vmatpush1.msra.mxu0 %v110
    %329 = vmatprep.subr.mxu0 0.0
    %330 = vmatpush1.msra.mxu0 %v105
    %331 = vmatprep.subr.mxu0 0.0
    %332 = vmatpush1.msra.mxu0 %v100
    %333 = vmatprep.subr.mxu0 0.0
    %334 = vmatpush1.msra.mxu0 %v95
    %335 = vmatprep.subr.mxu0 0.0
    %336 = vmatpush1.msra.mxu0 %v90
    %337 = vmatprep.subr.mxu0 0.0
    %338 = vmatpush1.msra.mxu0 %v85
    %339 = vmatprep.subr.mxu0 0.0
    %340 = vmatpush1.msra.mxu0 %v80
    %341 = vmatprep.subr.mxu0 0.0
    %342 = vmatpush1.msra.mxu0 %v75
    %343 = vmatprep.subr.mxu0 0.0
    %344 = vmatpush1.msra.mxu0 %v70
    %345 = vmatprep.subr.mxu0 0.0
    %346 = vmatpush1.msra.mxu0 %v65
    %347 = vmatprep.subr.mxu0 0.0
    %348 = vmatpush1.msra.mxu0 %v60
    %349 = vmatprep.subr.mxu0 0.0
    %350 = vmatpush2.msra.mxu0 0.0
    %351 = vmatprep.subr.mxu0 0.0
    %352 = vmatpush2.msra.mxu0 0.0
    %353 = vmatprep.subr.mxu0 0.0
    %354 = vmatpush2.msra.mxu0 0.0
    %355 = vmatprep.subr.mxu0 0.0
    %356 = vmatpush2.msra.mxu0 0.0
    %357 = vmatprep.subr.mxu0 0.0
    %358 = vmatpush2.msra.mxu0 0.0
    %359 = vmatprep.subr.mxu0 0.0
    %360 = vmatpush2.msra.mxu0 0.0
    %361 = vmatprep.subr.mxu0 0.0
    %362 = vmatpush2.msra.mxu0 0.0
    %363 = vmatprep.subr.mxu0 0.0
    %364 = vmatpush2.msra.mxu0 0.0
    %365 = vmatprep.subr.mxu0 0.0
    %366 = vmatpush2.msra.mxu0 0.0
    %367 = vmatprep.subr.mxu0 0.0
    %368 = vmatpush2.msra.mxu0 0.0
    %369 = vmatprep.subr.mxu0 0.0
    %370 = vmatpush2.msra.mxu0 0.0
    %371 = vmatprep.subr.mxu0 0.0
    %372 = vmatpush2.msra.mxu0 0.0
    %373 = vmatprep.subr.mxu0 0.0
    %374 = vmatpush2.msra.mxu0 0.0
    %375 = vmatprep.subr.mxu0 0.0
    %376 = vmatpush2.msra.mxu0 0.0
    %377 = vmatprep.subr.mxu0 0.0
    %378 = vmatpush2.msra.mxu0 0.0
    %379 = vmatprep.subr.mxu0 0.0
    %380 = vmatpush2.msra.mxu0 0.0
    %381 = vmatprep.mubr.f32.mxu0 0.0
    %382 = vmatmul.mubr.f32.gmra.mxu0 %v54
    %v383 = vpop.f32.mrf.mxu0
    %v384 = vadd.f32 %v157, %v383
    %v385 = vpop.f32.mrf.mxu0
    %386 = vmatprep.mubr.f32.mxu0 0.0
    %387 = vmatmul.mubr.f32.gmra.mxu0 %v55
    %v388 = vpop.f32.mrf.mxu0
    %v389 = vadd.f32 %v157, %v388
    %v390 = vpop.f32.mrf.mxu0
    %391 = vdwg.mxu0
    %392 = vst [vmem:[#allocation8] sm:$0xff] %v230
    %393 = vst [vmem:[#allocation8 + $0x8] sm:$0xff] %v232
    %394 = vst [vmem:[#allocation8 + $0x10] sm:$0xff] %v307
    %395 = vst [vmem:[#allocation8 + $0x18] sm:$0xff] %v309
    %396 = vst [vmem:[#allocation8 + $0x20] sm:$0xff] %v384
    %397 = vst [vmem:[#allocation8 + $0x28] sm:$0xff] %v236
    %398 = vst [vmem:[#allocation8 + $0x30] sm:$0xff] %v238
    %399 = vst [vmem:[#allocation8 + $0x38] sm:$0xff] %v313
    %400 = vst [vmem:[#allocation8 + $0x40] sm:$0xff] %v315
    %401 = vst [vmem:[#allocation8 + $0x48] sm:$0xff] %v389
    // Predicated region
    $region26: #{tpu_custom_call.1} parent=1 // pred_check
      _
    $region27: #{tpu_custom_call.1} parent=1 // pred_check_branch
      %403 = sbr.rel (0) target = $region29
    $region28: #{tpu_custom_call.1} parent=1 // pred_region
      %s405 = ssub.s32 1280, 1280
      %406 = vsyncadd [#allocation4], %s405
      %s407 = sshll.u32 [#allocation8], 4
      %s408 = int_to_ptr.vmem [resolvable:$true] %s407
      %413 = dma.vmem_to_hbm [thread:$0]  %s408, 1280, %s3, [#allocation4], 640, 640, 40
    $region29: #{tpu_custom_call.1} parent=1 // pred_fallthru
      _
    // Predicated region
    $region30: #{tpu_custom_call.1} parent=1 // pred_check
      _
    $region31: #{tpu_custom_call.1} parent=1 // pred_check_branch
      %415 = sbr.rel (0) target = $region33
    $region32: #{tpu_custom_call.1} parent=1 // pred_region
      %416 = dma.done [#allocation4], 1280
    $region33: #{tpu_custom_call.1} parent=1 // pred_fallthru
      _
    %417 = vsyncpa [#allocation3], 1
    %418 = vsyncpa [#allocation6], 1
    %419 = vsyncpa [#allocation4], 1

</llo_original>
